<compile_context>
chip_gen: v6e
topology: v6e:2x2x1
jax: 0.10.0
libtpu: 0.0.40
codegen_flags: <defaults>
</compile_context>

<pallas_src>
import functools

import jax
import jax.numpy as jnp
from jax.experimental import pallas as pl
from jax.experimental.pallas import tpu as pltpu

_LANE = 128


def _round_up(x, m):
    return ((x + m - 1) // m) * m


def _vmem_budget_bytes():
    """Generation-aware VMEM budget: ~48 MiB on v7x (64 MiB/TC), ~96 MiB on v5e/v6e."""
    try:
        cap = int(pltpu.get_tpu_info().vmem_capacity_bytes)
    except Exception:  # pragma: no cover - conservative fallback (v7x per-TC size)
        cap = 64 * 1024 * 1024
    return min((cap * 3) // 4, 96 * 1024 * 1024)


# -----------------------------------------------------------------------------
# Tiled path: width % 128 == 0 and n_classes % 128 == 0.
# Output block (i, j) is constant across the K axis -> VMEM-resident accumulator.
# -----------------------------------------------------------------------------
def _tiled_kernel(x_ref, w_ref, b_ref, o_ref):
    k = pl.program_id(2)

    @pl.when(k == 0)
    def _():
        o_ref[...] = jnp.broadcast_to(b_ref[...], o_ref.shape)

    o_ref[...] += jnp.dot(
        x_ref[...].astype(w_ref.dtype),      # bf16 x bf16 -> full MXU rate
        w_ref[...],
        preferred_element_type=jnp.float32,  # f32 accumulation into resident o_ref
    )


def _tiled_vmem_bytes(tm, tn, tk, x_itemsize, w_itemsize):
    return (2 * tm * tk * x_itemsize        # x tiles (double-buffered)
            + 2 * tk * tn * w_itemsize      # weight tiles (double-buffered)
            + 2 * tn * 4                    # bias tile
            + 2 * tm * tn * 4)              # resident f32 output (+ writeback buffer)


def _pick_tiles(B, n_classes, width, x_itemsize, w_itemsize, budget):
    tn_cands = [c for c in (512, 256, 128) if n_classes % c == 0]
    tk_cands = [c for c in (512, 256, 128) if width % c == 0]
    tm_cands = [B] + [c for c in (1024, 512, 256, 128, 64, 32, 16, 8)
                      if c < B and B % c == 0]
    tm, tn, tk = tm_cands[-1], tn_cands[-1], tk_cands[-1]       # smallest-tile fallback
    found = False
    for tm_c in tm_cands:            # prioritize tm = B: weight is streamed exactly once
        for tn_c in tn_cands:
            for tk_c in tk_cands:
                if _tiled_vmem_bytes(tm_c, tn_c, tk_c, x_itemsize, w_itemsize) <= budget:
                    tm, tn, tk = tm_c, tn_c, tk_c
                    found = True
                    break
            if found:
                break
        if found:
            break
    # v7x megacore: keep at least one "parallel" grid axis of extent >= 2 when possible.
    if B // tm == 1 and n_classes // tn < 2:
        for c in (256, 128):
            if n_classes % c == 0 and n_classes // c >= 2:
                tn = c
                break
    return tm, tn, tk


def _linear_tiled(mixed_wave, w_t, bias2d, width):
    B, _ = mixed_wave.shape
    n_classes = w_t.shape[1]
    budget = _vmem_budget_bytes()
    tm, tn, tk = _pick_tiles(B, n_classes, width,
                             mixed_wave.dtype.itemsize, w_t.dtype.itemsize, budget)
    # K grid only spans width//tk blocks -> only the first `width` columns of
    # mixed_wave are ever DMA'd; the PyTorch-side slice is free.
    grid = (B // tm, n_classes // tn, width // tk)
    cost = pl.CostEstimate(
        flops=2 * B * width * n_classes,
        transcendentals=0,
        bytes_accessed=(mixed_wave.dtype.itemsize * B * width
                        + w_t.dtype.itemsize * width * n_classes
                        + 4 * n_classes + 4 * B * n_classes),
    )
    return pl.pallas_call(
        _tiled_kernel,
        out_shape=jax.ShapeDtypeStruct((B, n_classes), jnp.float32),
        grid=grid,
        in_specs=[
            pl.BlockSpec((tm, tk), lambda i, j, k: (i, k)),    # x tile (f32 in HBM)
            pl.BlockSpec((tk, tn), lambda i, j, k: (k, j)),    # pre-transposed bf16 W^T
            pl.BlockSpec((1, tn), lambda i, j, k: (0, j)),     # bias tile (lane-dense)
        ],
        out_specs=pl.BlockSpec((tm, tn), lambda i, j, k: (i, j)),
        compiler_params=pltpu.CompilerParams(
            dimension_semantics=("parallel", "parallel", "arbitrary"),
            vmem_limit_bytes=budget,
        ),
        cost_estimate=cost,
    )(mixed_wave, w_t, bias2d)


# -----------------------------------------------------------------------------
# Small / lane-unaligned path: whole-width block, weight resident, optional M tiling.
# -----------------------------------------------------------------------------
def _small_kernel(x_ref, w_ref, b_ref, o_ref, *, width):
    x = x_ref[:, :width]                      # static slice of the VMEM block (a view)
    acc = jnp.dot(x.astype(w_ref.dtype), w_ref[...],
                  preferred_element_type=jnp.float32)
    o_ref[...] = (acc + b_ref[...]).astype(o_ref.dtype)


def _linear_small(mixed_wave, w_t, bias2d, width):
    B, L = mixed_wave.shape
    n_classes = w_t.shape[1]
    # Only DMA the lane-aligned prefix that covers `width` columns (not all of L).
    x_blk = min(L, _round_up(width, _LANE))
    budget = _vmem_budget_bytes()

    def vmem_bytes(tm):
        return (2 * tm * x_blk * mixed_wave.dtype.itemsize
                + width * n_classes * w_t.dtype.itemsize     # weight resident (1 copy)
                + n_classes * 4
                + 2 * tm * n_classes * 4)

    tm = B
    if vmem_bytes(B) > budget:                # robustness for large-but-unaligned shapes
        for c in (1024, 512, 256, 128, 64, 32, 16, 8):
            if c < B and B % c == 0 and vmem_bytes(c) <= budget:
                tm = c
                break
    grid = (B // tm,)
    cost = pl.CostEstimate(
        flops=2 * B * width * n_classes,
        transcendentals=0,
        bytes_accessed=(mixed_wave.dtype.itemsize * B * x_blk
                        + w_t.dtype.itemsize * width * n_classes
                        + 4 * n_classes + 4 * B * n_classes),
    )
    return pl.pallas_call(
        functools.partial(_small_kernel, width=width),
        out_shape=jax.ShapeDtypeStruct((B, n_classes), jnp.float32),
        grid=grid,
        in_specs=[
            pl.BlockSpec((tm, x_blk), lambda i: (i, 0)),            # x prefix tile
            pl.BlockSpec((width, n_classes), lambda i: (0, 0)),     # W^T, DMA'd once
            pl.BlockSpec((1, n_classes), lambda i: (0, 0)),         # bias, DMA'd once
        ],
        out_specs=pl.BlockSpec((tm, n_classes), lambda i: (i, 0)),
        compiler_params=pltpu.CompilerParams(
            dimension_semantics=("parallel",),
            vmem_limit_bytes=budget,
        ),
        cost_estimate=cost,
    )(mixed_wave, w_t, bias2d)


def linear_pallas(mixed_wave, w_t, bias2d, width):
    """y = mixed_wave[:, :width] @ W.T + b, with W stored pre-transposed as (width, n)."""
    B, L = mixed_wave.shape
    w_width, n_classes = w_t.shape
    assert w_width == width and L >= width
    if width % _LANE == 0 and n_classes % _LANE == 0:
        return _linear_tiled(mixed_wave, w_t, bias2d, width)
    return _linear_small(mixed_wave, w_t, bias2d, width)


class PlaceHolderModelPallas:
    """JAX/Pallas port of speaksep.model.placeholder_model.PlaceHolderModel."""

    def __init__(self, n_classes, width, key, *, weight_dtype=jnp.bfloat16):
        self.width = width
        self.n_classes = n_classes
        k_w, k_b = jax.random.split(key)
        # f32 master copy, mirroring nn.Linear's uniform(-1/sqrt(width), 1/sqrt(width)).
        bound = 1.0 / float(width) ** 0.5
        self.weight = jax.random.uniform(
            k_w, (n_classes, width), jnp.float32, minval=-bound, maxval=bound
        )
        self.bias = jax.random.uniform(
            k_b, (n_classes,), jnp.float32, minval=-bound, maxval=bound
        )
        # One-time layout/dtype prep; forward() does no per-call transposes or casts of W.
        #  * W^T -> canonical (tm,tk) x (tk,tn) MXU contraction, no relayout risk.
        #  * bf16 weight halves the dominant HBM stream; accumulation stays f32.
        self._w_t = jnp.asarray(self.weight.T, dtype=weight_dtype)
        self._bias2d = self.bias.reshape(1, n_classes)

    def forward(self, mixed_wave, **batch):
        preds = linear_pallas(mixed_wave, self._w_t, self._bias2d, self.width)
        return {"separated": mixed_wave, "predicted_speakers": preds}


if __name__ == "__main__":
    key = jax.random.PRNGKey(0)
    k_m1, k_x1, k_m2, k_x2 = jax.random.split(key, 4)

    # ---- Small / unaligned shapes -> single-block path (width slice fused in-kernel) ----
    batch, width, n_classes, wave_len = 2, 32, 4, 64
    model = PlaceHolderModelPallas(n_classes=n_classes, width=width, key=k_m1)
    mixed_wave = jax.random.normal(k_x1, (batch, wave_len), jnp.float32)

    out = model.forward(mixed_wave)
    jax.block_until_ready(out["predicted_speakers"])
    jax.block_until_ready(out["separated"])

    ref = mixed_wave[:, :width] @ model.weight.T + model.bias
    assert out["predicted_speakers"].shape == (batch, n_classes)
    assert out["separated"].shape == (batch, wave_len)
    assert jnp.allclose(out["predicted_speakers"], ref, atol=2e-2, rtol=2e-2)

    # ---- Lane-aligned shapes -> tiled path (multi-step K accumulation into output) ----
    batch2, width2, n_classes2, wave_len2 = 16, 1024, 256, 1152
    model2 = PlaceHolderModelPallas(n_classes=n_classes2, width=width2, key=k_m2)
    mixed_wave2 = jax.random.normal(k_x2, (batch2, wave_len2), jnp.float32)

    out2 = model2.forward(mixed_wave2)
    jax.block_until_ready(out2["predicted_speakers"])

    ref2 = mixed_wave2[:, :width2] @ model2.weight.T + model2.bias
    assert out2["predicted_speakers"].shape == (batch2, n_classes2)
    assert out2["separated"].shape == (batch2, wave_len2)
    assert jnp.allclose(out2["predicted_speakers"], ref2, atol=3e-2, rtol=3e-2)

    print("KERNEL_OK")
</pallas_src>

<mosaic_0001>
module attributes {stable_mosaic.version = 11 : i64} {
  func.func @_small_kernel(%arg0: i32, %arg1: memref<2x64xf32, #tpu.memory_space<vmem>>, %arg2: memref<32x4xbf16, #tpu.memory_space<vmem>>, %arg3: memref<1x4xf32, #tpu.memory_space<vmem>>, %arg4: memref<2x4xf32, #tpu.memory_space<vmem>>) attributes {dimension_semantics = [#tpu.dimension_semantics<parallel>], iteration_bounds = array<i64: 1>, scalar_prefetch = 0 : i64, scratch_operands = 0 : i64, tpu.core_type = #tpu.core_type<tc>, window_params = [{transform_indices = @transform_0, window_bounds = array<i64: 2, 64>}, {pipeline_mode = #tpu.pipeline_mode<synchronous>, transform_indices = @transform_1, window_bounds = array<i64: 32, 4>}, {pipeline_mode = #tpu.pipeline_mode<synchronous>, transform_indices = @transform_2, window_bounds = array<i64: 1, 4>}, {transform_indices = @transform_3, window_bounds = array<i64: 2, 4>}]} {
    %c0 = arith.constant 0 : index
    %c0_0 = arith.constant 0 : index
    %0 = vector.load %arg1[%c0, %c0_0] : memref<2x64xf32, #tpu.memory_space<vmem>>, vector<2x32xf32>
    %1 = arith.truncf %0 : vector<2x32xf32> to vector<2x32xbf16>
    %c0_1 = arith.constant 0 : index
    %c0_2 = arith.constant 0 : index
    %2 = vector.load %arg2[%c0_1, %c0_2] : memref<32x4xbf16, #tpu.memory_space<vmem>>, vector<32x4xbf16>
    %cst = arith.constant dense<0.000000e+00> : vector<2x4xf32>
    %3 = tpu.matmul %1, %2, %cst {dimension_numbers = #tpu.dot_dimension_numbers<[1], [0], [0], [1], [0, 0, 1, 1], [], []>} : vector<2x32xbf16>, vector<32x4xbf16>, vector<2x4xf32> -> vector<2x4xf32>
    %c0_3 = arith.constant 0 : index
    %c0_4 = arith.constant 0 : index
    %4 = vector.load %arg3[%c0_3, %c0_4] : memref<1x4xf32, #tpu.memory_space<vmem>>, vector<1x4xf32>
    %5 = vector.broadcast %4 : vector<1x4xf32> to vector<2x4xf32>
    %6 = arith.addf %3, %5 : vector<2x4xf32>
    %c0_5 = arith.constant 0 : index
    %c0_6 = arith.constant 0 : index
    %7 = vector.load %arg4[%c0_5, %c0_6] : memref<2x4xf32, #tpu.memory_space<vmem>>, vector<2x4xf32>
    tpu.vector_store %arg4[%c0_5, %c0_6], %6 {strides = array<i32>} : memref<2x4xf32, #tpu.memory_space<vmem>>, vector<2x4xf32>,
    return
  }
  func.func @transform_0(%arg0: i32) -> (i32, i32) {
    %c0_i32 = arith.constant 0 : i32
    %c0_i32_0 = arith.constant 0 : i32
    return %arg0, %c0_i32 : i32, i32
  }
  func.func @transform_1(%arg0: i32) -> (i32, i32) {
    %c0_i32 = arith.constant 0 : i32
    %c0_i32_0 = arith.constant 0 : i32
    %c0_i32_1 = arith.constant 0 : i32
    return %c0_i32, %c0_i32_0 : i32, i32
  }
  func.func @transform_2(%arg0: i32) -> (i32, i32) {
    %c0_i32 = arith.constant 0 : i32
    %c0_i32_0 = arith.constant 0 : i32
    %c0_i32_1 = arith.constant 0 : i32
    return %c0_i32, %c0_i32_0 : i32, i32
  }
  func.func @transform_3(%arg0: i32) -> (i32, i32) {
    %c0_i32 = arith.constant 0 : i32
    %c0_i32_0 = arith.constant 0 : i32
    return %arg0, %c0_i32 : i32, i32
  }
}

</mosaic_0001>

<llo_original>
// kernel: tpu_custom_call.1
$region0: #{tpu_custom_call.1}
  #allocation0 [shape = 'u32[]', space=smem, size = 0x4, offset = 0x4, fixed_abs, tag = 'smem constant byte address 0x4 - core index']
  #allocation1 [shape = 'u32[144,128]{1,0:T(1,128)}', space=vmem, size = 0x12000, scoped, tag = 'internal scratch']
  %s0 = inlined_call_operand.vmem [shape: f32[2,64], index: 0, kind: input, shape index: {}]
  %s1 = inlined_call_operand.vmem [shape: bf16[32,4], index: 1, kind: input, shape index: {}]
  %s2 = inlined_call_operand.vmem [shape: f32[1,4], index: 2, kind: input, shape index: {}]
  %s3 = inlined_call_operand.hbm [shape: f32[2,4], index: 3, kind: output, shape index: {}]
  %s4 = sld [smem:[#allocation0]]
  $region22: #{tpu_custom_call.1} parent=0
    _
  %s6 = ssub.s32 1, %s4
  %s7 = scalar_select 0, %s6, %s4
  $region1: #{tpu_custom_call.1} parent=0
    #allocation2 [shape = 'u8[1024]{0}', space=vmem, size = 0x400, scoped, tag = 'output window, operand 0, single buffered']
    #allocation3 [shape = 's32[1]{0}', space=sflag, size = 0x4, scoped, tag = 'scoped memory for tpu_custom_call.1']
    %8 = vsyncpa [#allocation3], 0
    // Predicated region
    $region2: #{tpu_custom_call.1} parent=1 // pred_check
      _
    $region3: #{tpu_custom_call.1} parent=1 // pred_check_branch
      %10 = sbr.rel (0) target = $region5
    $region4: #{tpu_custom_call.1} parent=1 // pred_region
      _
    $region5: #{tpu_custom_call.1} parent=1 // pred_fallthru
      _
    // Predicated region
    $region6: #{tpu_custom_call.1} parent=1 // pred_check
      _
    $region7: #{tpu_custom_call.1} parent=1 // pred_check_branch
      %12 = sbr.rel (0) target = $region9
    $region8: #{tpu_custom_call.1} parent=1 // pred_region
      _
    $region9: #{tpu_custom_call.1} parent=1 // pred_fallthru
      _
    // Predicated region
    $region10: #{tpu_custom_call.1} parent=1 // pred_check
      _
    $region11: #{tpu_custom_call.1} parent=1 // pred_check_branch
      %14 = sbr.rel (0) target = $region13
    $region12: #{tpu_custom_call.1} parent=1 // pred_region
      _
    $region13: #{tpu_custom_call.1} parent=1 // pred_fallthru
      _
    %v16 = vld [vmem:[%s0] sm:$0x3]
    %v17 = vpack.c.bf16 %v16, %v16
    %v18 = vld [vmem:[%s1] sm:$0xf]
    %v19 = vld [vmem:[%s1 + $0x4] sm:$0xf]
    %v20 = vld [vmem:[%s1 + $0x8] sm:$0xf]
    %v21 = vld [vmem:[%s1 + $0xc] sm:$0xf]
    %v22 = vld [vmem:[%s2] sm:$0x1]
    %v24 = vlaneseq
    %v25 = vshrl.u32 %v24, 7
    %v26 = vsub.s32 0, %v25
    %v27 = vrot.slane %v22, %v26
    %v33 = vunpack.c.l.b16 %v18
    %v34 = vunpack.c.l.b16 %v19
    %v35 = vunpack.c.l.b16 %v20
    %v36 = vunpack.c.l.b16 %v21
    %v37 = vpack.c.b16 %v34, %v33
    %v38 = vpack.c.b16 %v36, %v35
    %vm41 = vcmask 261120
    %v43 = vsel %vm41, %v17, 0
    %45 = vmatprep.subr.bf16.mxu0 0
    %46 = vmatpush1.bf16.msra.mxu0 0
    %47 = vmatprep.subr.bf16.mxu0 0
    %48 = vmatpush1.bf16.msra.mxu0 0
    %49 = vmatprep.subr.bf16.mxu0 0
    %50 = vmatpush1.bf16.msra.mxu0 0
    %51 = vmatprep.subr.bf16.mxu0 0
    %52 = vmatpush1.bf16.msra.mxu0 0
    %53 = vmatprep.subr.bf16.mxu0 0
    %54 = vmatpush1.bf16.msra.mxu0 0
    %55 = vmatprep.subr.bf16.mxu0 0
    %56 = vmatpush1.bf16.msra.mxu0 0
    %57 = vmatprep.subr.bf16.mxu0 0
    %58 = vmatpush1.bf16.msra.mxu0 %v38
    %59 = vmatprep.subr.bf16.mxu0 0
    %60 = vmatpush1.bf16.msra.mxu0 %v37
    %61 = vmatprep.subr.bf16.mxu0 0
    %62 = vmatpush2.bf16.msra.mxu0 0
    %63 = vmatprep.subr.bf16.mxu0 0
    %64 = vmatpush2.bf16.msra.mxu0 0
    %65 = vmatprep.subr.bf16.mxu0 0
    %66 = vmatpush2.bf16.msra.mxu0 0
    %67 = vmatprep.subr.bf16.mxu0 0
    %68 = vmatpush2.bf16.msra.mxu0 0
    %69 = vmatprep.subr.bf16.mxu0 0
    %70 = vmatpush2.bf16.msra.mxu0 0
    %71 = vmatprep.subr.bf16.mxu0 0
    %72 = vmatpush2.bf16.msra.mxu0 0
    %73 = vmatprep.subr.bf16.mxu0 0
    %74 = vmatpush2.bf16.msra.mxu0 0
    %75 = vmatprep.subr.bf16.mxu0 0
    %76 = vmatpush2.bf16.msra.mxu0 0
    %77 = vmatprep.mubr.bf16.mxu0 0
    %78 = vmatmul.mubr.bf16.gmra.mxu0 %v43
    %v79 = vpop.f32.mrf.mxu0
    %v80 = vadd.f32 %v27, %v79
    %v81 = vpop.f32.mrf.mxu0
    %v82 = vpop.f32.mrf.mxu0
    %v83 = vpop.f32.mrf.mxu0
    %84 = vdwg.mxu0
    %vm85 = vcmask 25600
    %86 = vst.msk [vmem:[#allocation2] sm:$0x3] %vm85, %v80
    // Predicated region
    $region14: #{tpu_custom_call.1} parent=1 // pred_check
      _
    $region15: #{tpu_custom_call.1} parent=1 // pred_check_branch
      %88 = sbr.rel (0) target = $region17
    $region16: #{tpu_custom_call.1} parent=1 // pred_region
      %s90 = ssub.s32 32, 32
      %91 = vsyncadd [#allocation3], %s90
      %s93 = sshll.u32 [#allocation2], 4
      %s94 = int_to_ptr.vmem [resolvable:$true] %s93
      %96 = dma.vmem_to_hbm [thread:$0]  %s94, 32, %s3, [#allocation3]
    $region17: #{tpu_custom_call.1} parent=1 // pred_fallthru
      _
    // Predicated region
    $region18: #{tpu_custom_call.1} parent=1 // pred_check
      _
    $region19: #{tpu_custom_call.1} parent=1 // pred_check_branch
      %98 = sbr.rel (0) target = $region21
    $region20: #{tpu_custom_call.1} parent=1 // pred_region
      %99 = dma.done [#allocation3], 32
    $region21: #{tpu_custom_call.1} parent=1 // pred_fallthru
      _
    %100 = vsyncpa [#allocation3], 1

</llo_original>
